<compile_context>
chip_gen: v7x
topology: tpu7x:2x2x1
jax: 0.10.0
libtpu: 0.0.40
codegen_flags: <defaults>
</compile_context>

<pallas_src>
import jax
import jax.numpy as jnp
from jax.experimental import pallas as pl
from jax.experimental.pallas import tpu as pltpu


# --------------------------------------------------------------------------- #
# Pallas kernel: 1x1 conv == (Cout, Cin) @ (Cin, tile) + bias, per batch elem. #
# --------------------------------------------------------------------------- #
def _conv1x1_kernel(w_ref, b_ref, x_ref, o_ref):
    # w: (Cout, Cin)  b: (Cout, 1)  x: (Cin, tile)  o: (Cout, tile)
    o_ref[...] = (
        jnp.dot(w_ref[...], x_ref[...], preferred_element_type=jnp.float32)
        + b_ref[...]
    ).astype(o_ref.dtype)


def _vmem_capacity_bytes():
    """Per-TensorCore VMEM budget, conservatively clamped."""
    try:
        cap = int(pltpu.get_tpu_info().vmem_capacity_bytes)
    except Exception:
        cap = 64 * 1024 * 1024
    try:
        kind = jax.devices()[0].device_kind.lower()
        # v5e/v5p/v6e have 128 MiB per core; anything else (notably v7x, whose
        # query may report chip-level VMEM across 2 TCs) is clamped to 64 MiB.
        if not ("v5" in kind or "v6" in kind):
            cap = min(cap, 64 * 1024 * 1024)
    except Exception:
        cap = min(cap, 64 * 1024 * 1024)
    return cap


def _pick_tile(cin, cout, pixels, itemsize, vmem_bytes, n_batch):
    """Lane-dense pixel tile: wide enough (~2 MiB/step of in+out) to hide the
    ~0.35us per-step pipeline overhead and keep stores unmasked, small enough
    for double-buffered blocks to fit the VMEM budget, and balanced across
    tiles so the masked ragged edge stays under 128 lanes per tile."""
    block_budget = vmem_bytes // 4                     # headroom for scratch
    per_lane_db = 2 * (cin + cout) * itemsize          # double-buffered in+out
    vmem_lanes = max(128, (block_budget // per_lane_db) // 128 * 128)

    target_lanes = pl.cdiv(2 * 1024 * 1024, (cin + cout) * itemsize)
    target_lanes = pl.cdiv(target_lanes, 128) * 128
    cap = min(vmem_lanes, max(target_lanes, 512), 65536)

    p_aligned = pl.cdiv(pixels, 128) * 128
    cap = min(cap, p_aligned)

    n_tiles = pl.cdiv(pixels, cap)
    if n_batch < 2 and pixels >= 256:
        n_tiles = max(n_tiles, 2)      # keep both v7x TensorCores busy at N=1
    tile = pl.cdiv(pl.cdiv(pixels, n_tiles), 128) * 128
    return int(tile)


def conv1x1_pallas(weight, bias, x_nchw):
    """1x1 conv on NCHW input as a tiled Pallas matmul over flattened pixels.

    weight: (Cout, Cin)   bias: (Cout,)   x_nchw: (N, Cin, H, W)
    returns (N, Cout, H, W)
    """
    N, C, H, W = x_nchw.shape
    cout, cin = weight.shape
    assert cin == C

    P = H * W
    itemsize = jnp.dtype(x_nchw.dtype).itemsize
    vmem_bytes = _vmem_capacity_bytes()
    tile = _pick_tile(cin, cout, P, itemsize, vmem_bytes, N)
    grid = (N, pl.cdiv(P, tile))

    # Channel-major per batch element already: a free metadata reshape.
    x_flat = x_nchw.reshape(N, cin, P)

    flops = 2 * N * cout * cin * P
    bytes_accessed = itemsize * (N * cin * P + N * cout * P + cout * cin + cout)
    cost = pl.CostEstimate(flops=int(flops), transcendentals=0,
                           bytes_accessed=int(bytes_accessed))

    # Note: weight/bias are grid-resident (constant index_map).  Their double
    # buffering is negligible here; with very large Cin*Cout consider
    # pipeline_mode=pl.Buffered(1) (or folding bias into an extra weight
    # column) to reclaim VMEM for a wider pixel tile on v7x.
    y_flat = pl.pallas_call(
        _conv1x1_kernel,
        out_shape=jax.ShapeDtypeStruct((N, cout, P), x_nchw.dtype),
        grid=grid,
        in_specs=[
            pl.BlockSpec((cout, cin), lambda n, i: (0, 0)),   # weight (resident)
            pl.BlockSpec((cout, 1), lambda n, i: (0, 0)),     # bias   (resident)
            pl.BlockSpec((None, cin, tile), lambda n, i: (n, 0, i)),  # pixel tile
        ],
        out_specs=pl.BlockSpec((None, cout, tile), lambda n, i: (n, 0, i)),
        compiler_params=pltpu.CompilerParams(
            dimension_semantics=("parallel", "parallel"),  # shards across v7x TCs
            vmem_limit_bytes=int(vmem_bytes // 2),
        ),
        cost_estimate=cost,
    )(weight, bias.reshape(cout, 1), x_flat)

    return y_flat.reshape(N, cout, H, W)


def upsample_forward(x, feature_map, weight, bias):
    """x: (N, C, H, W); feature_map: (N, C//2, 2H, 2W); returns (N, C, 2H, 2W)."""
    N, C, H, W = x.shape

    # Conv BEFORE upsample (mathematically identical for 1x1 conv + nearest).
    y = conv1x1_pallas(weight, bias, x)                        # (N, C//2, H, W)
    cout = y.shape[1]

    # Single broadcast+reshape 2x nearest upsample; XLA fuses it with the
    # channel concat into one output copy fusion (no intermediate repeat).
    up_y = jnp.broadcast_to(
        y[:, :, :, None, :, None], (N, cout, H, 2, W, 2)
    ).reshape(N, cout, 2 * H, 2 * W)

    # TODO(synk): folding the 2x upsample + channel concat into the kernel's
    # output epilogue (lane-interleaved stores into an aliased full-size
    # output) would remove the y round trip to HBM; left as XLA glue because
    # Mosaic has no clean lane-interleave store primitive.
    return jnp.concatenate([up_y, feature_map], axis=1)        # (N, C, 2H, 2W)


if __name__ == "__main__":
    key = jax.random.PRNGKey(0)
    k_x, k_f, k_w, k_b = jax.random.split(key, 4)

    N, C, H, W = 2, 4, 16, 16
    cout = C // 2

    x = jax.random.normal(k_x, (N, C, H, W), dtype=jnp.float32)
    feature_map = jax.random.normal(k_f, (N, cout, 2 * H, 2 * W), dtype=jnp.float32)

    # Conv2d(C, C//2, 1, 1) parameters; PyTorch weight (Cout, Cin, 1, 1) -> (Cout, Cin).
    weight = jax.random.normal(k_w, (cout, C), dtype=jnp.float32) * 0.1
    bias = jax.random.normal(k_b, (cout,), dtype=jnp.float32) * 0.1

    fwd = jax.jit(upsample_forward)
    out = jax.block_until_ready(fwd(x, feature_map, weight, bias))

    # Correctness check vs. a pure-JAX reference of the ORIGINAL op order.
    up_ref = jnp.repeat(jnp.repeat(x, 2, axis=2), 2, axis=3)
    conv_ref = jnp.einsum("oc,nchw->nohw", weight, up_ref) + bias[None, :, None, None]
    ref = jnp.concatenate([conv_ref, feature_map], axis=1)
    assert out.shape == (N, C, 2 * H, 2 * W)
    assert jnp.allclose(out, ref, atol=1e-5, rtol=1e-5)

    print("KERNEL_OK")
</pallas_src>

<mosaic_0001>
module attributes {stable_mosaic.version = 11 : i64} {
  func.func @_conv1x1_kernel(%arg0: i32, %arg1: i32, %arg2: memref<2x4xf32, #tpu.memory_space<vmem>>, %arg3: memref<2x1xf32, #tpu.memory_space<vmem>>, %arg4: memref<1x4x256xf32, #tpu.memory_space<vmem>>, %arg5: memref<1x2x256xf32, #tpu.memory_space<vmem>>) attributes {dimension_semantics = [#tpu.dimension_semantics<parallel>, #tpu.dimension_semantics<parallel>], iteration_bounds = array<i64: 2, 1>, scalar_prefetch = 0 : i64, scratch_operands = 0 : i64, tpu.core_type = #tpu.core_type<tc>, window_params = [{pipeline_mode = #tpu.pipeline_mode<synchronous>, transform_indices = @transform_0, window_bounds = array<i64: 2, 4>}, {pipeline_mode = #tpu.pipeline_mode<synchronous>, transform_indices = @transform_1, window_bounds = array<i64: 2, 1>}, {transform_indices = @transform_2, window_bounds = array<i64: 1, 4, 256>}, {transform_indices = @transform_3, window_bounds = array<i64: 1, 2, 256>}]} {
    %c0 = arith.constant 0 : index
    %c0_0 = arith.constant 0 : index
    %0 = vector.load %arg2[%c0, %c0_0] : memref<2x4xf32, #tpu.memory_space<vmem>>, vector<2x4xf32>
    %c0_1 = arith.constant 0 : index
    %c0_2 = arith.constant 0 : index
    %c0_3 = arith.constant 0 : index
    %1 = vector.load %arg4[%c0_1, %c0_2, %c0_3] : memref<1x4x256xf32, #tpu.memory_space<vmem>>, vector<1x4x256xf32>
    %2 = vector.shape_cast %1 : vector<1x4x256xf32> to vector<4x256xf32>
    %cst = arith.constant dense<0.000000e+00> : vector<2x256xf32>
    %3 = tpu.matmul %0, %2, %cst {dimension_numbers = #tpu.dot_dimension_numbers<[1], [0], [0], [1], [0, 0, 1, 1], [], []>} : vector<2x4xf32>, vector<4x256xf32>, vector<2x256xf32> -> vector<2x256xf32>
    %c0_4 = arith.constant 0 : index
    %c0_5 = arith.constant 0 : index
    %4 = vector.load %arg3[%c0_4, %c0_5] : memref<2x1xf32, #tpu.memory_space<vmem>>, vector<2x1xf32>
    %5 = vector.broadcast %4 : vector<2x1xf32> to vector<2x256xf32>
    %6 = arith.addf %3, %5 : vector<2x256xf32>
    %c0_6 = arith.constant 0 : index
    %c0_7 = arith.constant 0 : index
    %c0_8 = arith.constant 0 : index
    %7 = vector.load %arg5[%c0_6, %c0_7, %c0_8] : memref<1x2x256xf32, #tpu.memory_space<vmem>>, vector<1x2x256xf32>
    %8 = vector.shape_cast %7 : vector<1x2x256xf32> to vector<2x256xf32>
    %9 = vector.shape_cast %6 : vector<2x256xf32> to vector<1x2x256xf32>
    tpu.vector_store %arg5[%c0_6, %c0_7, %c0_8], %9 {strides = array<i32>} : memref<1x2x256xf32, #tpu.memory_space<vmem>>, vector<1x2x256xf32>,
    return
  }
  func.func @transform_0(%arg0: i32, %arg1: i32) -> (i32, i32) {
    %c0_i32 = arith.constant 0 : i32
    %c0_i32_0 = arith.constant 0 : i32
    %c0_i32_1 = arith.constant 0 : i32
    return %c0_i32, %c0_i32_0 : i32, i32
  }
  func.func @transform_1(%arg0: i32, %arg1: i32) -> (i32, i32) {
    %c0_i32 = arith.constant 0 : i32
    %c0_i32_0 = arith.constant 0 : i32
    %c0_i32_1 = arith.constant 0 : i32
    return %c0_i32, %c0_i32_0 : i32, i32
  }
  func.func @transform_2(%arg0: i32, %arg1: i32) -> (i32, i32, i32) {
    %c0_i32 = arith.constant 0 : i32
    %c0_i32_0 = arith.constant 0 : i32
    return %arg0, %c0_i32, %arg1 : i32, i32, i32
  }
  func.func @transform_3(%arg0: i32, %arg1: i32) -> (i32, i32, i32) {
    %c0_i32 = arith.constant 0 : i32
    %c0_i32_0 = arith.constant 0 : i32
    return %arg0, %c0_i32, %arg1 : i32, i32, i32
  }
}

</mosaic_0001>

<llo_original>
// kernel: upsample_forward.1
$region0: #{upsample_forward.1}
  #allocation0 [shape = 'u32[]', space=smem, size = 0x4, offset = 0x4, fixed_abs, tag = 'smem constant byte address 0x4 - core index']
  #allocation1 [shape = 'u32[144,128]{1,0:T(1,128)}', space=vmem, size = 0x12000, scoped, tag = 'internal scratch']
  %s0 = inlined_call_operand.vmem [shape: f32[2,4], index: 0, kind: input, shape index: {}]
  %s1 = inlined_call_operand.vmem [shape: f32[2,1], index: 1, kind: input, shape index: {}]
  %s2 = inlined_call_operand.vmem [shape: f32[2,4,256], index: 2, kind: input, shape index: {}]
  %s3 = inlined_call_operand.vmem [shape: f32[2,2,256], index: 3, kind: output, shape index: {}]
  %s4 = sld [smem:[#allocation0]]
  $region45: #{upsample_forward.1} parent=0
    _
  %s6 = ssub.s32 1, %s4
  %s7 = scalar_select 0, %s6, %s4
  loop: start=0, step=1, limit=4
  $region2: #{upsample_forward.1} parent=0 // loop_pre_header
    _
  $region3: #{upsample_forward.1} parent=0 // loop_header
    %s9 = sphi 0, %s13
    %p10 = scmp.ge.s32.totalorder %s9, 4
    %s16 = sphi 0, %s28
    %s17 = sphi 0, %s24
    %s18 = sphi 0, %s16
    %s19 = sphi 0, %s17
    %s20 = sphi 0, %s18
    %s21 = sphi 0, %s19
    %s29 = sphi 0, %s29
    %s31 = sphi 0, %s29
    %s32 = sphi 0, %s31
    %s46 = sphi 0, %s32
    %s50 = sphi 0, %s50
    %s52 = sphi 0, %s50
    %s53 = sphi 0, %s52
    %s67 = sphi 0, %s53
    %s75 = sphi 0, %s77
    %s78 = sphi 0, %s75
    %s79 = sphi 0, %s78
    %s95 = sphi 0, %s79
    %s103 = sphi 0, %s105
    %s106 = sphi 0, %s103
    %s107 = sphi 0, %s106
    %s123 = sphi 0, %s107
  $region4: #{upsample_forward.1} parent=0 // loop_header_branch
    %12 = sbr.rel (%p10) target = $region8
  $region5: #{upsample_forward.1} parent=0 // loop_body
    %s14 = ssub.s32 %s9, 1
    %s15 = ssub.s32 %s9, 2
    %s22 = sadd.s32 1, %s17
    %p23 = scmp.ge.s32.totalorder %s22, 1
    %s24 = scalar_select %p23, 0, %s22
    %s25 = sadd.s32 1, %s16
    %s26 = scalar_select %p23, %s25, %s16
    %p27 = scmp.ge.s32.totalorder %s26, 2
    %s28 = scalar_select %p27, 0, %s26
    %s30 = sadd.s32 %s29, 1
    %p33 = scmp.eq.s32.totalorder %s9, 1
    %p34 = scmp.ne.s32.totalorder %s29, %s31
    %p35 = scmp.eq.s32.totalorder %s9, 0
    %p36 = por %p34, %p35
    %p37 = scmp.ne.s32.totalorder %s29, %s31
    %p38 = scmp.eq.s32.totalorder %s14, 1
    %p39 = por %p37, %p38
    %p40 = scmp.ne.s32.totalorder %s31, %s32
    %p41 = scmp.eq.s32.totalorder %s14, 0
    %p42 = por %p40, %p41
    %p43 = scmp.ne.s32.totalorder %s31, %s32
    %p44 = scmp.eq.s32.totalorder %s15, 1
    %p45 = por %p43, %p44
    %p47 = scmp.ne.s32.totalorder %s32, %s46
    %p48 = scmp.eq.s32.totalorder %s15, 0
    %p49 = por %p47, %p48
    %s51 = sadd.s32 %s50, 1
    %p54 = scmp.eq.s32.totalorder %s9, 1
    %p55 = scmp.ne.s32.totalorder %s50, %s52
    %p56 = scmp.eq.s32.totalorder %s9, 0
    %p57 = por %p55, %p56
    %p58 = scmp.ne.s32.totalorder %s50, %s52
    %p59 = scmp.eq.s32.totalorder %s14, 1
    %p60 = por %p58, %p59
    %p61 = scmp.ne.s32.totalorder %s52, %s53
    %p62 = scmp.eq.s32.totalorder %s14, 0
    %p63 = por %p61, %p62
    %p64 = scmp.ne.s32.totalorder %s52, %s53
    %p65 = scmp.eq.s32.totalorder %s15, 1
    %p66 = por %p64, %p65
    %p68 = scmp.ne.s32.totalorder %s53, %s67
    %p69 = scmp.eq.s32.totalorder %s15, 0
    %p70 = por %p68, %p69
    %s71 = ssub.s32 %s16, %s28
    %s72 = ssub.s32 %s17, %s24
    %s73 = sor.u32 %s71, %s72
    %p74 = scmp.eq.s32.totalorder %s73, 0
    %s76 = sadd.s32 %s75, 1
    %s77 = scalar_select %p74, %s75, %s76
    %p80 = pneg %p74
    %p81 = scmp.eq.s32.totalorder %s9, 1
    %p82 = por %p80, %p81
    %p83 = scmp.ne.s32.totalorder %s75, %s78
    %p84 = scmp.eq.s32.totalorder %s9, 0
    %p85 = por %p83, %p84
    %p86 = scmp.ne.s32.totalorder %s75, %s78
    %p87 = scmp.eq.s32.totalorder %s14, 1
    %p88 = por %p86, %p87
    %p89 = scmp.ne.s32.totalorder %s78, %s79
    %p90 = scmp.eq.s32.totalorder %s14, 0
    %p91 = por %p89, %p90
    %p92 = scmp.ne.s32.totalorder %s78, %s79
    %p93 = scmp.eq.s32.totalorder %s15, 1
    %p94 = por %p92, %p93
    %p96 = scmp.ne.s32.totalorder %s79, %s95
    %p97 = scmp.eq.s32.totalorder %s15, 0
    %p98 = por %p96, %p97
    %s99 = ssub.s32 %s16, %s28
    %s100 = ssub.s32 %s17, %s24
    %s101 = sor.u32 %s99, %s100
    %p102 = scmp.eq.s32.totalorder %s101, 0
    %s104 = sadd.s32 %s103, 1
    %s105 = scalar_select %p102, %s103, %s104
    %p108 = pneg %p102
    %p109 = scmp.eq.s32.totalorder %s9, 1
    %p110 = por %p108, %p109
    %p111 = scmp.ne.s32.totalorder %s103, %s106
    %p112 = scmp.eq.s32.totalorder %s9, 0
    %p113 = por %p111, %p112
    %p114 = scmp.ne.s32.totalorder %s103, %s106
    %p115 = scmp.eq.s32.totalorder %s14, 1
    %p116 = por %p114, %p115
    %p117 = scmp.ne.s32.totalorder %s106, %s107
    %p118 = scmp.eq.s32.totalorder %s14, 0
    %p119 = por %p117, %p118
    %p120 = scmp.ne.s32.totalorder %s106, %s107
    %p121 = scmp.eq.s32.totalorder %s15, 1
    %p122 = por %p120, %p121
    %p124 = scmp.ne.s32.totalorder %s107, %s123
    %p125 = scmp.eq.s32.totalorder %s15, 0
    %p126 = por %p124, %p125
    %p127 = scmp.le.s32.totalorder 1, %s9
    %p128 = scmp.lt.s32.totalorder %s9, 3
    %p129 = pnand %p127, %p128
    %p130 = pneg %p129
    // Predicated region
    $region9: #{upsample_forward.1} parent=5 // pred_check
      _
    $region10: #{upsample_forward.1} parent=5 // pred_check_branch
      %132 = sbr.rel (%p129) target = $region12
    $region11: #{upsample_forward.1} parent=5 // pred_region
      %s133 = ssub.s32 %s9, 1
      // Predicated region
      $region13: #{upsample_forward.1} parent=11 // pred_check
        %p134 = pneg %p42
      $region14: #{upsample_forward.1} parent=11 // pred_check_branch
        %136 = sbr.rel (%p134) target = $region16
      $region15: #{upsample_forward.1} parent=11 // pred_region
        _
      $region16: #{upsample_forward.1} parent=11 // pred_fallthru
        _
      // Predicated region
      $region17: #{upsample_forward.1} parent=11 // pred_check
        %p137 = pneg %p63
      $region18: #{upsample_forward.1} parent=11 // pred_check_branch
        %139 = sbr.rel (%p137) target = $region20
      $region19: #{upsample_forward.1} parent=11 // pred_region
        _
      $region20: #{upsample_forward.1} parent=11 // pred_fallthru
        _
    $region12: #{upsample_forward.1} parent=5 // pred_fallthru
      _
    %p140 = scmp.lt.s32.totalorder %s9, 2
    // Predicated region
    $region21: #{upsample_forward.1} parent=5 // pred_check
      %p141 = pneg %p140
    $region22: #{upsample_forward.1} parent=5 // pred_check_branch
      %143 = sbr.rel (%p141) target = $region24
    $region23: #{upsample_forward.1} parent=5 // pred_region
      // Predicated region
      $region25: #{upsample_forward.1} parent=23 // pred_check
        %p144 = pneg %p85
      $region26: #{upsample_forward.1} parent=23 // pred_check_branch
        %146 = sbr.rel (%p144) target = $region28
      $region27: #{upsample_forward.1} parent=23 // pred_region
        %s147 = smul.u32 2, %s17
        %p148 = scmp.lt.s32.totalorder %s16, 1
        %s149 = scalar_select %p148, %s16, 1
        %p150 = scmp.lt.s32.totalorder %s147, 1
        %s151 = scalar_select %p150, %s147, 1
        %s152 = smul.addr %s149, 2
        %s153 = sadd.s32 %s151, %s152
        %s154 = smul.addr %s153, 4
        %s155 = scalar_lea.vmem %s2, %s154
        %s156 = smul.u32 2, %s17
      $region28: #{upsample_forward.1} parent=23 // pred_fallthru
        _
    $region24: #{upsample_forward.1} parent=5 // pred_fallthru
      _
    %p157 = scmp.le.s32.totalorder 1, %s9
    %p158 = scmp.lt.s32.totalorder %s9, 3
    %p159 = pnand %p157, %p158
    %p160 = pneg %p159
    // Predicated region
    $region29: #{upsample_forward.1} parent=5 // pred_check
      _
    $region30: #{upsample_forward.1} parent=5 // pred_check_branch
      %162 = sbr.rel (%p159) target = $region32
    $region31: #{upsample_forward.1} parent=5 // pred_region
      %s163 = ssub.s32 %s9, 1
      %p164 = pneg %p42
      %p165 = pneg %p39
      %p166 = pneg %p63
      %p167 = pneg %p60
      %s168 = smul.u32 2, %s19
      %p169 = scmp.lt.s32.totalorder %s18, 1
      %s170 = scalar_select %p169, %s18, 1
      %p171 = scmp.lt.s32.totalorder %s168, 1
      %s172 = scalar_select %p171, %s168, 1
      %s173 = smul.addr %s170, 2
      %s174 = sadd.s32 %s172, %s173
      %s175 = smul.addr %s174, 4
      %s176 = scalar_lea.vmem %s2, %s175
      %p177 = pneg %p91
      %p178 = pneg %p88
      %p179 = pneg %p119
      %p180 = pneg %p116
      %s181 = smul.u32 2, %s19
      %p182 = scmp.lt.s32.totalorder %s18, 1
      %s183 = scalar_select %p182, %s18, 1
      %p184 = scmp.lt.s32.totalorder %s181, 1
      %s185 = scalar_select %p184, %s181, 1
      %s186 = smul.addr %s183, 2
      %s187 = sadd.s32 %s185, %s186
      %s188 = smul.addr %s187, 2
      %s189 = scalar_lea.vmem %s3, %s188
      %s190 = smul.u32 2, %s19
      %p191 = scmp.lt.s32.totalorder %s18, 1
      %s192 = scalar_select %p191, %s18, 1
      %p193 = scmp.lt.s32.totalorder %s190, 1
      %s194 = scalar_select %p193, %s190, 1
      %s195 = smul.addr %s192, 2
      %s196 = sadd.s32 %s194, %s195
      %s197 = smul.addr %s196, 4
      %s198 = scalar_lea.vmem %s2, %s197
      %s199 = smul.u32 2, %s19
      %s200 = smul.u32 2, %s19
      %p201 = scmp.lt.s32.totalorder %s18, 1
      %s202 = scalar_select %p201, %s18, 1
      %p203 = scmp.lt.s32.totalorder %s200, 1
      %s204 = scalar_select %p203, %s200, 1
      %s205 = smul.addr %s202, 2
      %s206 = sadd.s32 %s204, %s205
      %s207 = smul.addr %s206, 2
      %s208 = scalar_lea.vmem %s3, %s207
      %s209 = smul.u32 2, %s19
      %v210 = vld [vmem:[%s0] sm:$0x3]
      %v211 = vld [vmem:[%s198] sm:$0xff]
      %v212 = vld [vmem:[%s1] sm:$0x3]
      %214 = vset.pattern.permute.xlu0 0
      %215 = vperm.xlu0 %214, %v212
      %v216 = vpop.permute.xlu0 %215
      %v219 = vcombine.high %v211, %v211
      %vm220 = vcmask 31744
      %v222 = vsel %vm220, %v210, 0
      %vm224 = vcmask 1043456
      %v225 = vsel %vm224, %v211, 0
      %v227 = vsel %vm224, %v219, 0
      %229 = vmatprep.subr.mxu0 %v227
      %230 = vmatpush1.msra.mxu0 %v225
      %231 = vmatprep.subr.mxu0 0.0
      %232 = vmatpush1.msra.mxu0 0.0
      %233 = vmatprep.subr.mxu0 0.0
      %234 = vmatpush1.msra.mxu0 0.0
      %235 = vmatprep.subr.mxu0 0.0
      %236 = vmatpush1.msra.mxu0 0.0
      %237 = vmatprep.subr.mxu0 0.0
      %238 = vmatpush1.msra.mxu0 0.0
      %239 = vmatprep.subr.mxu0 0.0
      %240 = vmatpush1.msra.mxu0 0.0
      %241 = vmatprep.subr.mxu0 0.0
      %242 = vmatpush1.msra.mxu0 0.0
      %243 = vmatprep.subr.mxu0 0.0
      %244 = vmatpush1.msra.mxu0 0.0
      %245 = vmatprep.subr.mxu0 0.0
      %246 = vmatpush1.msra.mxu0 0.0
      %247 = vmatprep.subr.mxu0 0.0
      %248 = vmatpush1.msra.mxu0 0.0
      %249 = vmatprep.subr.mxu0 0.0
      %250 = vmatpush1.msra.mxu0 0.0
      %251 = vmatprep.subr.mxu0 0.0
      %252 = vmatpush1.msra.mxu0 0.0
      %253 = vmatprep.subr.mxu0 0.0
      %254 = vmatpush1.msra.mxu0 0.0
      %255 = vmatprep.subr.mxu0 0.0
      %256 = vmatpush1.msra.mxu0 0.0
      %257 = vmatprep.subr.mxu0 0.0
      %258 = vmatpush1.msra.mxu0 0.0
      %259 = vmatprep.subr.mxu0 0.0
      %260 = vmatpush1.msra.mxu0 0.0
      %261 = vmatprep.subr.mxu0 0.0
      %262 = vmatpush1.msra.mxu0 0.0
      %263 = vmatprep.subr.mxu0 0.0
      %264 = vmatpush1.msra.mxu0 0.0
      %265 = vmatprep.subr.mxu0 0.0
      %266 = vmatpush1.msra.mxu0 0.0
      %267 = vmatprep.subr.mxu0 0.0
      %268 = vmatpush1.msra.mxu0 0.0
      %269 = vmatprep.subr.mxu0 0.0
      %270 = vmatpush1.msra.mxu0 0.0
      %271 = vmatprep.subr.mxu0 0.0
      %272 = vmatpush1.msra.mxu0 0.0
      %273 = vmatprep.subr.mxu0 0.0
      %274 = vmatpush1.msra.mxu0 0.0
      %275 = vmatprep.subr.mxu0 0.0
      %276 = vmatpush1.msra.mxu0 0.0
      %277 = vmatprep.subr.mxu0 0.0
      %278 = vmatpush1.msra.mxu0 0.0
      %279 = vmatprep.subr.mxu0 0.0
      %280 = vmatpush1.msra.mxu0 0.0
      %281 = vmatprep.subr.mxu0 0.0
      %282 = vmatpush1.msra.mxu0 0.0
      %283 = vmatprep.subr.mxu0 0.0
      %284 = vmatpush1.msra.mxu0 0.0
      %285 = vmatprep.subr.mxu0 0.0
      %286 = vmatpush1.msra.mxu0 0.0
      %287 = vmatprep.subr.mxu0 0.0
      %288 = vmatpush1.msra.mxu0 0.0
      %289 = vmatprep.subr.mxu0 0.0
      %290 = vmatpush1.msra.mxu0 0.0
      %291 = vmatprep.subr.mxu0 0.0
      %292 = vmatpush1.msra.mxu0 0.0
      %293 = vmatprep.mubr.f32.mxu0 0.0
      %294 = vmatmul.mubr.f32.gmra.mrb[0].mxu0 %v222
      %v295 = vpop.f32.mrb[0].mxu0
      %v296 = vadd.f32 %v216, %v295
      %v297 = vpop.f32.mrb[0].mxu0
      %v298 = vadd.f32 %v216, %v297
      %299 = vdwg.mxu0
      %v302 = vcombine.low %v296, %v298
      %v304 = vunpack.c.l.s4 1983009808
      %v305 = vunpack.c.0.s8 %v304
      %v306 = vlaneseq
      %v307 = vshrl.u32 %v306, 7
      %v308 = vsub.s32 %v305, %v307
      %v309 = vrot.slane %v302, %v308
      %311 = vst [vmem:[%s208] sm:$0xf] %v309
      %s312 = smul.u32 2, %s19
      %p313 = scmp.lt.s32.totalorder %s18, 1
      %s314 = scalar_select %p313, %s18, 1
      %p315 = scmp.lt.s32.totalorder %s312, 1
      %s316 = scalar_select %p315, %s312, 1
      %s317 = smul.addr %s314, 2
      %s318 = sadd.s32 %s316, %s317
      %s319 = smul.addr %s318, 2
      %s320 = scalar_lea.vmem %s3, %s319
      // Predicated region
      $region33: #{upsample_forward.1} parent=31 // pred_check
        %p321 = pneg %p116
      $region34: #{upsample_forward.1} parent=31 // pred_check_branch
        %323 = sbr.rel (%p321) target = $region36
      $region35: #{upsample_forward.1} parent=31 // pred_region
        %s324 = smul.u32 2, %s19
      $region36: #{upsample_forward.1} parent=31 // pred_fallthru
        _
    $region32: #{upsample_forward.1} parent=5 // pred_fallthru
      _
    %p325 = scmp.le.s32.totalorder 2, %s9
    // Predicated region
    $region37: #{upsample_forward.1} parent=5 // pred_check
      %p326 = pneg %p325
    $region38: #{upsample_forward.1} parent=5 // pred_check_branch
      %328 = sbr.rel (%p326) target = $region40
    $region39: #{upsample_forward.1} parent=5 // pred_region
      %s329 = ssub.s32 %s9, 2
      // Predicated region
      $region41: #{upsample_forward.1} parent=39 // pred_check
        %p330 = pneg %p122
      $region42: #{upsample_forward.1} parent=39 // pred_check_branch
        %332 = sbr.rel (%p330) target = $region44
      $region43: #{upsample_forward.1} parent=39 // pred_region
        %s333 = smul.u32 2, %s21
        %p334 = scmp.lt.s32.totalorder %s20, 1
        %s335 = scalar_select %p334, %s20, 1
        %p336 = scmp.lt.s32.totalorder %s333, 1
        %s337 = scalar_select %p336, %s333, 1
        %s338 = smul.addr %s335, 2
        %s339 = sadd.s32 %s337, %s338
        %s340 = smul.addr %s339, 2
        %s341 = scalar_lea.vmem %s3, %s340
      $region44: #{upsample_forward.1} parent=39 // pred_fallthru
        _
    $region40: #{upsample_forward.1} parent=5 // pred_fallthru
      _
  $region6: #{upsample_forward.1} parent=0 // loop_footer
    %s13 = sadd.s32 1, %s9
  $region7: #{upsample_forward.1} parent=0 // loop_footer_branch
    %8 = sbr.rel target = $region3
  $region8: #{upsample_forward.1} parent=0 // loop_exit
    _

</llo_original>
